<compile_context>
chip_gen: v7x
topology: tpu7x:2x2x1
jax: 0.10.0
libtpu: 0.0.40
codegen_flags: <defaults>
</compile_context>

<pallas_src>
import jax
import jax.numpy as jnp
from jax.experimental import pallas as pl
from jax.experimental.pallas import tpu as pltpu


def _interp_matrix_1d(out_size: int, in_size: int) -> jnp.ndarray:
    """1-D bilinear interpolation matrix (align_corners=True), shape (out, in)."""
    idx = jnp.arange(out_size, dtype=jnp.float32)
    src = idx * (in_size - 1) / (out_size - 1)
    i0 = jnp.clip(jnp.floor(src).astype(jnp.int32), 0, in_size - 1)
    i1 = jnp.clip(i0 + 1, 0, in_size - 1)
    frac = src - i0.astype(jnp.float32)
    cols = jnp.arange(in_size)
    m = ((cols[None, :] == i0[:, None]).astype(jnp.float32) * (1.0 - frac)[:, None]
         + (cols[None, :] == i1[:, None]).astype(jnp.float32) * frac[:, None])
    return m  # (out_size, in_size)


def upproj_kernel(x_ref, wwt_ref, a_ref, shift_ref, o_ref):
    # x_ref     : (1, C_in*H, W)       one batch element; row index = (c, h)
    # wwt_ref   : (W, W2)              W-axis interpolation matrix (transposed)
    # a_ref     : (C_out*H2, C_in*H)   kron(conv_w * bn_scale, wh): fused 1x1-conv + H-upsample
    # shift_ref : (C_out*H2, 1)        BN shift (beta - mean*scale), repeated H2x per channel
    # o_ref     : (1, C_out*H2, W2)    row index = (o, i)
    x = x_ref[0]                                                         # (C_in*H, W)
    # Separable W-axis bilinear upsample as one MXU matmul.
    t = jnp.dot(x, wwt_ref[...], preferred_element_type=jnp.float32)    # (C_in*H, W2)
    # Fused H-axis upsample + 1x1 conv (BN scale pre-folded into the weights).
    y = jnp.dot(a_ref[...], t, preferred_element_type=jnp.float32)      # (C_out*H2, W2)
    # Minimal epilogue: BN shift + ReLU.
    y = y + shift_ref[...]
    o_ref[0] = jnp.maximum(y, 0.0).astype(o_ref.dtype)


def upproj_forward(x, conv_w, bn_gamma, bn_beta, bn_mean, bn_var, eps=1e-5):
    """x: (N, C_in, H, W) float32.  Returns (N, C_out, 2H, 2W) float32."""
    N, C_in, H, W = x.shape
    C_out = conv_w.shape[0]
    H2, W2 = 2 * H, 2 * W

    # Parameter / glue setup (plain JAX, tiny).
    wh = _interp_matrix_1d(H2, H)                      # (H2, H)
    ww = _interp_matrix_1d(W2, W)                      # (W2, W)
    wwt = ww.T.astype(jnp.float32)                     # (W, W2)

    inv_std = 1.0 / jnp.sqrt(bn_var + eps)
    scale = (bn_gamma * inv_std).astype(jnp.float32)                       # (C_out,)
    shift = (bn_beta - bn_mean * bn_gamma * inv_std).astype(jnp.float32)   # (C_out,)

    # Fold BN scale into the 1x1 conv weight, then fuse conv with the H-upsample:
    # A[(o,i), (c,h)] = (w[o,c] * scale[o]) * wh[i,h]
    w_s = conv_w.reshape(C_out, C_in).astype(jnp.float32) * scale[:, None]
    a_op = jnp.kron(w_s, wh)                           # (C_out*H2, C_in*H)
    shift_rows = jnp.repeat(shift, H2).reshape(C_out * H2, 1)

    # Free wrapper-side reshape: rows of x2 are (c, h) pairs, lanes are W.
    x2 = x.reshape(N, C_in * H, W).astype(jnp.float32)

    flops = 2 * N * (C_in * H * W * W2 + (C_out * H2) * (C_in * H) * W2)
    bytes_accessed = 4 * (x2.size + wwt.size + a_op.size + shift_rows.size
                          + N * C_out * H2 * W2)

    out_flat = pl.pallas_call(
        upproj_kernel,
        out_shape=jax.ShapeDtypeStruct((N, C_out * H2, W2), jnp.float32),
        grid_spec=pltpu.PrefetchScalarGridSpec(
            num_scalar_prefetch=0,
            grid=(N,),
            in_specs=[
                pl.BlockSpec((1, C_in * H, W), lambda n: (n, 0, 0)),
                pl.BlockSpec((W, W2), lambda n: (0, 0)),
                pl.BlockSpec((C_out * H2, C_in * H), lambda n: (0, 0)),
                pl.BlockSpec((C_out * H2, 1), lambda n: (0, 0)),
            ],
            out_specs=pl.BlockSpec((1, C_out * H2, W2), lambda n: (n, 0, 0)),
        ),
        compiler_params=pltpu.CompilerParams(
            dimension_semantics=("parallel",)),
        cost_estimate=pl.CostEstimate(flops=flops, transcendentals=0,
                                      bytes_accessed=bytes_accessed),
    )(x2, wwt, a_op, shift_rows)

    # Free reshape back to NCHW.
    return out_flat.reshape(N, C_out, H2, W2)


def upproj_reference(x, conv_w, bn_gamma, bn_beta, bn_mean, bn_var, eps=1e-5):
    """Pure-JAX reference (separable bilinear upsample, 1x1 conv, BN-inference, ReLU)."""
    N, C_in, H, W = x.shape
    C_out = conv_w.shape[0]
    wh = _interp_matrix_1d(2 * H, H)
    ww = _interp_matrix_1d(2 * W, W)
    up = jnp.einsum('Hh,nchw,Ww->ncHW', wh, x.astype(jnp.float32), ww)
    y = jnp.einsum('oc,nchw->nohw', conv_w.reshape(C_out, C_in).astype(jnp.float32), up)
    inv_std = 1.0 / jnp.sqrt(bn_var + eps)
    scale = (bn_gamma * inv_std).reshape(1, C_out, 1, 1)
    shift = (bn_beta - bn_mean * bn_gamma * inv_std).reshape(1, C_out, 1, 1)
    return jnp.maximum(y * scale + shift, 0.0)


if __name__ == "__main__":
    # Small, deterministic setup: batch=2, in_channels=4, out_channels=8, spatial=16x16.
    N, C_in, C_out, H, W = 2, 4, 8, 16, 16

    key = jax.random.PRNGKey(0)
    kx, kw, kg, kb, km, kv = jax.random.split(key, 6)

    x = jax.random.normal(kx, (N, C_in, H, W), dtype=jnp.float32)
    conv_w = jax.random.normal(kw, (C_out, C_in, 1, 1), dtype=jnp.float32) * 0.2
    # BatchNorm used in inference form with deterministic (non-trivial) stats.
    # TODO(synk): training-mode BN (batch statistics + running-stat update) is not modeled.
    bn_gamma = 1.0 + 0.1 * jax.random.normal(kg, (C_out,), dtype=jnp.float32)
    bn_beta = 0.1 * jax.random.normal(kb, (C_out,), dtype=jnp.float32)
    bn_mean = 0.1 * jax.random.normal(km, (C_out,), dtype=jnp.float32)
    bn_var = jnp.abs(1.0 + 0.1 * jax.random.normal(kv, (C_out,), dtype=jnp.float32))

    out = upproj_forward(x, conv_w, bn_gamma, bn_beta, bn_mean, bn_var)
    out = jax.block_until_ready(out)

    ref = upproj_reference(x, conv_w, bn_gamma, bn_beta, bn_mean, bn_var)
    assert out.shape == (N, C_out, 2 * H, 2 * W), out.shape
    assert jnp.all(jnp.isfinite(out))
    assert jnp.allclose(out, ref, atol=1e-4, rtol=1e-4), float(jnp.max(jnp.abs(out - ref)))

    print("KERNEL_OK")
</pallas_src>

<mosaic_0001>
module attributes {stable_mosaic.version = 11 : i64} {
  func.func @upproj_kernel(%arg0: i32, %arg1: memref<1x64x16xf32, #tpu.memory_space<vmem>>, %arg2: memref<16x32xf32, #tpu.memory_space<vmem>>, %arg3: memref<256x64xf32, #tpu.memory_space<vmem>>, %arg4: memref<256x1xf32, #tpu.memory_space<vmem>>, %arg5: memref<1x256x32xf32, #tpu.memory_space<vmem>>) attributes {dimension_semantics = [#tpu.dimension_semantics<parallel>], iteration_bounds = array<i64: 2>, scalar_prefetch = 0 : i64, scratch_operands = 0 : i64, tpu.core_type = #tpu.core_type<tc>, window_params = [{transform_indices = @transform_0, window_bounds = array<i64: 1, 64, 16>}, {pipeline_mode = #tpu.pipeline_mode<synchronous>, transform_indices = @transform_1, window_bounds = array<i64: 16, 32>}, {pipeline_mode = #tpu.pipeline_mode<synchronous>, transform_indices = @transform_2, window_bounds = array<i64: 256, 64>}, {pipeline_mode = #tpu.pipeline_mode<synchronous>, transform_indices = @transform_3, window_bounds = array<i64: 256, 1>}, {transform_indices = @transform_4, window_bounds = array<i64: 1, 256, 32>}]} {
    %c0 = arith.constant 0 : index
    %c0_0 = arith.constant 0 : index
    %c0_1 = arith.constant 0 : index
    %0 = vector.load %arg1[%c0, %c0_0, %c0_1] : memref<1x64x16xf32, #tpu.memory_space<vmem>>, vector<1x64x16xf32>
    %1 = vector.shape_cast %0 : vector<1x64x16xf32> to vector<64x16xf32>
    %c0_2 = arith.constant 0 : index
    %c0_3 = arith.constant 0 : index
    %2 = vector.load %arg2[%c0_2, %c0_3] : memref<16x32xf32, #tpu.memory_space<vmem>>, vector<16x32xf32>
    %cst = arith.constant dense<0.000000e+00> : vector<64x32xf32>
    %3 = tpu.matmul %1, %2, %cst {dimension_numbers = #tpu.dot_dimension_numbers<[1], [0], [0], [1], [0, 0, 1, 1], [], []>} : vector<64x16xf32>, vector<16x32xf32>, vector<64x32xf32> -> vector<64x32xf32>
    %c0_4 = arith.constant 0 : index
    %c0_5 = arith.constant 0 : index
    %4 = vector.load %arg3[%c0_4, %c0_5] : memref<256x64xf32, #tpu.memory_space<vmem>>, vector<256x64xf32>
    %cst_6 = arith.constant dense<0.000000e+00> : vector<256x32xf32>
    %5 = tpu.matmul %4, %3, %cst_6 {dimension_numbers = #tpu.dot_dimension_numbers<[1], [0], [0], [1], [0, 0, 1, 1], [], []>} : vector<256x64xf32>, vector<64x32xf32>, vector<256x32xf32> -> vector<256x32xf32>
    %c0_7 = arith.constant 0 : index
    %c0_8 = arith.constant 0 : index
    %6 = vector.load %arg4[%c0_7, %c0_8] : memref<256x1xf32, #tpu.memory_space<vmem>>, vector<256x1xf32>
    %7 = vector.broadcast %6 : vector<256x1xf32> to vector<256x32xf32>
    %8 = arith.addf %5, %7 : vector<256x32xf32>
    %cst_9 = arith.constant 0.000000e+00 : f32
    %9 = vector.broadcast %cst_9 : f32 to vector<256x32xf32>
    %10 = arith.maximumf %8, %9 : vector<256x32xf32>
    %c0_10 = arith.constant 0 : index
    %c0_11 = arith.constant 0 : index
    %c0_12 = arith.constant 0 : index
    %11 = vector.load %arg5[%c0_10, %c0_11, %c0_12] : memref<1x256x32xf32, #tpu.memory_space<vmem>>, vector<1x256x32xf32>
    %12 = vector.shape_cast %11 : vector<1x256x32xf32> to vector<256x32xf32>
    %13 = vector.shape_cast %10 : vector<256x32xf32> to vector<1x256x32xf32>
    tpu.vector_store %arg5[%c0_10, %c0_11, %c0_12], %13 {strides = array<i32>} : memref<1x256x32xf32, #tpu.memory_space<vmem>>, vector<1x256x32xf32>,
    return
  }
  func.func @transform_0(%arg0: i32) -> (i32, i32, i32) {
    %c0_i32 = arith.constant 0 : i32
    %c0_i32_0 = arith.constant 0 : i32
    %c0_i32_1 = arith.constant 0 : i32
    return %arg0, %c0_i32, %c0_i32_0 : i32, i32, i32
  }
  func.func @transform_1(%arg0: i32) -> (i32, i32) {
    %c0_i32 = arith.constant 0 : i32
    %c0_i32_0 = arith.constant 0 : i32
    %c0_i32_1 = arith.constant 0 : i32
    return %c0_i32, %c0_i32_0 : i32, i32
  }
  func.func @transform_2(%arg0: i32) -> (i32, i32) {
    %c0_i32 = arith.constant 0 : i32
    %c0_i32_0 = arith.constant 0 : i32
    %c0_i32_1 = arith.constant 0 : i32
    return %c0_i32, %c0_i32_0 : i32, i32
  }
  func.func @transform_3(%arg0: i32) -> (i32, i32) {
    %c0_i32 = arith.constant 0 : i32
    %c0_i32_0 = arith.constant 0 : i32
    %c0_i32_1 = arith.constant 0 : i32
    return %c0_i32, %c0_i32_0 : i32, i32
  }
  func.func @transform_4(%arg0: i32) -> (i32, i32, i32) {
    %c0_i32 = arith.constant 0 : i32
    %c0_i32_0 = arith.constant 0 : i32
    %c0_i32_1 = arith.constant 0 : i32
    return %arg0, %c0_i32, %c0_i32_0 : i32, i32, i32
  }
}

</mosaic_0001>

<llo_original>
// kernel: tpu_custom_call.1
$region0: #{tpu_custom_call.1}
  #allocation0 [shape = 'u32[]', space=smem, size = 0x4, offset = 0x4, fixed_abs, tag = 'smem constant byte address 0x4 - core index']
  #allocation1 [shape = 'u32[144,128]{1,0:T(1,128)}', space=vmem, size = 0x12000, scoped, tag = 'internal scratch']
  %s0 = inlined_call_operand.vmem [shape: f32[2,64,16], index: 0, kind: input, shape index: {}]
  %s1 = inlined_call_operand.vmem [shape: f32[16,32], index: 1, kind: input, shape index: {}]
  %s2 = inlined_call_operand.vmem [shape: f32[256,64], index: 2, kind: input, shape index: {}]
  %s3 = inlined_call_operand.vmem [shape: f32[256,1], index: 3, kind: input, shape index: {}]
  %s4 = inlined_call_operand.vmem [shape: f32[2,256,32], index: 4, kind: output, shape index: {}]
  %s5 = sld [smem:[#allocation0]]
  $region49: #{tpu_custom_call.1} parent=0
    _
  %s7 = ssub.s32 1, %s5
  %s8 = scalar_select 0, %s7, %s5
  loop: start=0, step=1, limit=4
  $region2: #{tpu_custom_call.1} parent=0 // loop_pre_header
    _
  $region3: #{tpu_custom_call.1} parent=0 // loop_header
    %s10 = sphi 0, %s14
    %p11 = scmp.ge.s32.totalorder %s10, 4
    %s20 = sphi 0, %s22
    %s23 = sphi 0, %s20
    %s24 = sphi 0, %s23
    %s40 = sphi 0, %s24
    %s44 = sphi 0, %s44
    %s46 = sphi 0, %s44
    %s47 = sphi 0, %s46
    %s61 = sphi 0, %s47
    %s65 = sphi 0, %s65
    %s67 = sphi 0, %s65
    %s68 = sphi 0, %s67
    %s82 = sphi 0, %s68
    %s86 = sphi 0, %s86
    %s88 = sphi 0, %s86
    %s89 = sphi 0, %s88
    %s103 = sphi 0, %s89
    %s109 = sphi 0, %s111
    %s112 = sphi 0, %s109
    %s113 = sphi 0, %s112
    %s129 = sphi 0, %s113
  $region4: #{tpu_custom_call.1} parent=0 // loop_header_branch
    %13 = sbr.rel (%p11) target = $region8
  $region5: #{tpu_custom_call.1} parent=0 // loop_body
    %s15 = ssub.s32 %s10, 1
    %s16 = ssub.s32 %s10, 2
    %s17 = sadd.s32 %s10, 1
    %s18 = ssub.s32 %s10, %s17
    %p19 = scmp.eq.s32.totalorder %s18, 0
    %s21 = sadd.s32 %s20, 1
    %s22 = scalar_select %p19, %s20, %s21
    %p25 = pneg %p19
    %p26 = scmp.eq.s32.totalorder %s10, 1
    %p27 = por %p25, %p26
    %p28 = scmp.ne.s32.totalorder %s20, %s23
    %p29 = scmp.eq.s32.totalorder %s10, 0
    %p30 = por %p28, %p29
    %p31 = scmp.ne.s32.totalorder %s20, %s23
    %p32 = scmp.eq.s32.totalorder %s15, 1
    %p33 = por %p31, %p32
    %p34 = scmp.ne.s32.totalorder %s23, %s24
    %p35 = scmp.eq.s32.totalorder %s15, 0
    %p36 = por %p34, %p35
    %p37 = scmp.ne.s32.totalorder %s23, %s24
    %p38 = scmp.eq.s32.totalorder %s16, 1
    %p39 = por %p37, %p38
    %p41 = scmp.ne.s32.totalorder %s24, %s40
    %p42 = scmp.eq.s32.totalorder %s16, 0
    %p43 = por %p41, %p42
    %s45 = sadd.s32 %s44, 1
    %p48 = scmp.eq.s32.totalorder %s10, 1
    %p49 = scmp.ne.s32.totalorder %s44, %s46
    %p50 = scmp.eq.s32.totalorder %s10, 0
    %p51 = por %p49, %p50
    %p52 = scmp.ne.s32.totalorder %s44, %s46
    %p53 = scmp.eq.s32.totalorder %s15, 1
    %p54 = por %p52, %p53
    %p55 = scmp.ne.s32.totalorder %s46, %s47
    %p56 = scmp.eq.s32.totalorder %s15, 0
    %p57 = por %p55, %p56
    %p58 = scmp.ne.s32.totalorder %s46, %s47
    %p59 = scmp.eq.s32.totalorder %s16, 1
    %p60 = por %p58, %p59
    %p62 = scmp.ne.s32.totalorder %s47, %s61
    %p63 = scmp.eq.s32.totalorder %s16, 0
    %p64 = por %p62, %p63
    %s66 = sadd.s32 %s65, 1
    %p69 = scmp.eq.s32.totalorder %s10, 1
    %p70 = scmp.ne.s32.totalorder %s65, %s67
    %p71 = scmp.eq.s32.totalorder %s10, 0
    %p72 = por %p70, %p71
    %p73 = scmp.ne.s32.totalorder %s65, %s67
    %p74 = scmp.eq.s32.totalorder %s15, 1
    %p75 = por %p73, %p74
    %p76 = scmp.ne.s32.totalorder %s67, %s68
    %p77 = scmp.eq.s32.totalorder %s15, 0
    %p78 = por %p76, %p77
    %p79 = scmp.ne.s32.totalorder %s67, %s68
    %p80 = scmp.eq.s32.totalorder %s16, 1
    %p81 = por %p79, %p80
    %p83 = scmp.ne.s32.totalorder %s68, %s82
    %p84 = scmp.eq.s32.totalorder %s16, 0
    %p85 = por %p83, %p84
    %s87 = sadd.s32 %s86, 1
    %p90 = scmp.eq.s32.totalorder %s10, 1
    %p91 = scmp.ne.s32.totalorder %s86, %s88
    %p92 = scmp.eq.s32.totalorder %s10, 0
    %p93 = por %p91, %p92
    %p94 = scmp.ne.s32.totalorder %s86, %s88
    %p95 = scmp.eq.s32.totalorder %s15, 1
    %p96 = por %p94, %p95
    %p97 = scmp.ne.s32.totalorder %s88, %s89
    %p98 = scmp.eq.s32.totalorder %s15, 0
    %p99 = por %p97, %p98
    %p100 = scmp.ne.s32.totalorder %s88, %s89
    %p101 = scmp.eq.s32.totalorder %s16, 1
    %p102 = por %p100, %p101
    %p104 = scmp.ne.s32.totalorder %s89, %s103
    %p105 = scmp.eq.s32.totalorder %s16, 0
    %p106 = por %p104, %p105
    %s107 = ssub.s32 %s10, %s17
    %p108 = scmp.eq.s32.totalorder %s107, 0
    %s110 = sadd.s32 %s109, 1
    %s111 = scalar_select %p108, %s109, %s110
    %p114 = pneg %p108
    %p115 = scmp.eq.s32.totalorder %s10, 1
    %p116 = por %p114, %p115
    %p117 = scmp.ne.s32.totalorder %s109, %s112
    %p118 = scmp.eq.s32.totalorder %s10, 0
    %p119 = por %p117, %p118
    %p120 = scmp.ne.s32.totalorder %s109, %s112
    %p121 = scmp.eq.s32.totalorder %s15, 1
    %p122 = por %p120, %p121
    %p123 = scmp.ne.s32.totalorder %s112, %s113
    %p124 = scmp.eq.s32.totalorder %s15, 0
    %p125 = por %p123, %p124
    %p126 = scmp.ne.s32.totalorder %s112, %s113
    %p127 = scmp.eq.s32.totalorder %s16, 1
    %p128 = por %p126, %p127
    %p130 = scmp.ne.s32.totalorder %s113, %s129
    %p131 = scmp.eq.s32.totalorder %s16, 0
    %p132 = por %p130, %p131
    %p133 = scmp.le.s32.totalorder 1, %s10
    %p134 = scmp.lt.s32.totalorder %s10, 3
    %p135 = pnand %p133, %p134
    %p136 = pneg %p135
    // Predicated region
    $region9: #{tpu_custom_call.1} parent=5 // pred_check
      _
    $region10: #{tpu_custom_call.1} parent=5 // pred_check_branch
      %138 = sbr.rel (%p135) target = $region12
    $region11: #{tpu_custom_call.1} parent=5 // pred_region
      %s139 = ssub.s32 %s10, 1
      // Predicated region
      $region13: #{tpu_custom_call.1} parent=11 // pred_check
        %p140 = pneg %p57
      $region14: #{tpu_custom_call.1} parent=11 // pred_check_branch
        %142 = sbr.rel (%p140) target = $region16
      $region15: #{tpu_custom_call.1} parent=11 // pred_region
        _
      $region16: #{tpu_custom_call.1} parent=11 // pred_fallthru
        _
      // Predicated region
      $region17: #{tpu_custom_call.1} parent=11 // pred_check
        %p143 = pneg %p78
      $region18: #{tpu_custom_call.1} parent=11 // pred_check_branch
        %145 = sbr.rel (%p143) target = $region20
      $region19: #{tpu_custom_call.1} parent=11 // pred_region
        _
      $region20: #{tpu_custom_call.1} parent=11 // pred_fallthru
        _
      // Predicated region
      $region21: #{tpu_custom_call.1} parent=11 // pred_check
        %p146 = pneg %p99
      $region22: #{tpu_custom_call.1} parent=11 // pred_check_branch
        %148 = sbr.rel (%p146) target = $region24
      $region23: #{tpu_custom_call.1} parent=11 // pred_region
        _
      $region24: #{tpu_custom_call.1} parent=11 // pred_fallthru
        _
    $region12: #{tpu_custom_call.1} parent=5 // pred_fallthru
      _
    %p149 = scmp.lt.s32.totalorder %s10, 2
    // Predicated region
    $region25: #{tpu_custom_call.1} parent=5 // pred_check
      %p150 = pneg %p149
    $region26: #{tpu_custom_call.1} parent=5 // pred_check_branch
      %152 = sbr.rel (%p150) target = $region28
    $region27: #{tpu_custom_call.1} parent=5 // pred_region
      // Predicated region
      $region29: #{tpu_custom_call.1} parent=27 // pred_check
        %p153 = pneg %p30
      $region30: #{tpu_custom_call.1} parent=27 // pred_check_branch
        %155 = sbr.rel (%p153) target = $region32
      $region31: #{tpu_custom_call.1} parent=27 // pred_region
        %p156 = scmp.lt.s32.totalorder %s10, 1
        %s157 = scalar_select %p156, %s10, 1
        %s158 = smul.addr %s157, 8
        %s159 = smul.addr %s158, 8
        %s160 = scalar_lea.vmem %s0, %s159
      $region32: #{tpu_custom_call.1} parent=27 // pred_fallthru
        _
    $region28: #{tpu_custom_call.1} parent=5 // pred_fallthru
      _
    %p161 = scmp.le.s32.totalorder 1, %s10
    %p162 = scmp.lt.s32.totalorder %s10, 3
    %p163 = pnand %p161, %p162
    %p164 = pneg %p163
    // Predicated region
    $region33: #{tpu_custom_call.1} parent=5 // pred_check
      _
    $region34: #{tpu_custom_call.1} parent=5 // pred_check_branch
      %166 = sbr.rel (%p163) target = $region36
    $region35: #{tpu_custom_call.1} parent=5 // pred_region
      %s167 = ssub.s32 %s10, 1
      %p168 = scmp.lt.s32.totalorder %s15, 1
      %s169 = scalar_select %p168, %s15, 1
      %s170 = smul.addr %s169, 8
      %s171 = smul.addr %s170, 8
      %s172 = scalar_lea.vmem %s0, %s171
      %p173 = pneg %p36
      %p174 = pneg %p33
      %p175 = pneg %p57
      %p176 = pneg %p54
      %p177 = pneg %p78
      %p178 = pneg %p75
      %p179 = pneg %p99
      %p180 = pneg %p96
      %p181 = pneg %p125
      %p182 = pneg %p122
      %p183 = scmp.lt.s32.totalorder %s15, 1
      %s184 = scalar_select %p183, %s15, 1
      %s185 = smul.addr %s184, 32
      %s186 = smul.addr %s185, 8
      %s187 = scalar_lea.vmem %s4, %s186
      %p188 = scmp.lt.s32.totalorder %s15, 1
      %s189 = scalar_select %p188, %s15, 1
      %s190 = smul.addr %s189, 8
      %s191 = smul.addr %s190, 8
      %s192 = scalar_lea.vmem %s0, %s191
      %p193 = scmp.lt.s32.totalorder %s15, 1
      %s194 = scalar_select %p193, %s15, 1
      %s195 = smul.addr %s194, 32
      %s196 = smul.addr %s195, 8
      %s197 = scalar_lea.vmem %s4, %s196
      %v198 = vld [vmem:[%s192] sm:$0xff]
      %v199 = vld [vmem:[%s192 + $0x8] sm:$0xff]
      %v200 = vld [vmem:[%s192 + $0x10] sm:$0xff]
      %v201 = vld [vmem:[%s192 + $0x18] sm:$0xff]
      %v202 = vld [vmem:[%s192 + $0x20] sm:$0xff]
      %v203 = vld [vmem:[%s192 + $0x28] sm:$0xff]
      %v204 = vld [vmem:[%s192 + $0x30] sm:$0xff]
      %v205 = vld [vmem:[%s192 + $0x38] sm:$0xff]
      %v206 = vld [vmem:[%s1] sm:$0xff]
      %v207 = vld [vmem:[%s1 + $0x8] sm:$0xff]
      %vm208 = vcmask 130048
      %v210 = vsel %vm208, %v198, 0
      %v213 = vsel %vm208, %v199, 0
      %v216 = vsel %vm208, %v200, 0
      %v219 = vsel %vm208, %v201, 0
      %v222 = vsel %vm208, %v202, 0
      %v225 = vsel %vm208, %v203, 0
      %v228 = vsel %vm208, %v204, 0
      %v231 = vsel %vm208, %v205, 0
      %233 = vmatprep.subr.mxu0 0.0
      %234 = vmatpush1.msra.mxu0 %v206
      %235 = vmatprep.subr.mxu0 0.0
      %236 = vmatpush1.msra.mxu0 %v207
      %237 = vmatprep.subr.mxu0 0.0
      %238 = vmatpush1.msra.mxu0 0.0
      %239 = vmatprep.subr.mxu0 0.0
      %240 = vmatpush1.msra.mxu0 0.0
      %241 = vmatprep.subr.mxu0 0.0
      %242 = vmatpush1.msra.mxu0 0.0
      %243 = vmatprep.subr.mxu0 0.0
      %244 = vmatpush1.msra.mxu0 0.0
      %245 = vmatprep.subr.mxu0 0.0
      %246 = vmatpush1.msra.mxu0 0.0
      %247 = vmatprep.subr.mxu0 0.0
      %248 = vmatpush1.msra.mxu0 0.0
      %249 = vmatprep.subr.mxu0 0.0
      %250 = vmatpush1.msra.mxu0 0.0
      %251 = vmatprep.subr.mxu0 0.0
      %252 = vmatpush1.msra.mxu0 0.0
      %253 = vmatprep.subr.mxu0 0.0
      %254 = vmatpush1.msra.mxu0 0.0
      %255 = vmatprep.subr.mxu0 0.0
      %256 = vmatpush1.msra.mxu0 0.0
      %257 = vmatprep.subr.mxu0 0.0
      %258 = vmatpush1.msra.mxu0 0.0
      %259 = vmatprep.subr.mxu0 0.0
      %260 = vmatpush1.msra.mxu0 0.0
      %261 = vmatprep.subr.mxu0 0.0
      %262 = vmatpush1.msra.mxu0 0.0
      %263 = vmatprep.subr.mxu0 0.0
      %264 = vmatpush1.msra.mxu0 0.0
      %265 = vmatprep.subr.mxu0 0.0
      %266 = vmatpush1.msra.mxu0 0.0
      %267 = vmatprep.subr.mxu0 0.0
      %268 = vmatpush1.msra.mxu0 0.0
      %269 = vmatprep.subr.mxu0 0.0
      %270 = vmatpush1.msra.mxu0 0.0
      %271 = vmatprep.subr.mxu0 0.0
      %272 = vmatpush1.msra.mxu0 0.0
      %273 = vmatprep.subr.mxu0 0.0
      %274 = vmatpush1.msra.mxu0 0.0
      %275 = vmatprep.subr.mxu0 0.0
      %276 = vmatpush1.msra.mxu0 0.0
      %277 = vmatprep.subr.mxu0 0.0
      %278 = vmatpush1.msra.mxu0 0.0
      %279 = vmatprep.subr.mxu0 0.0
      %280 = vmatpush1.msra.mxu0 0.0
      %281 = vmatprep.subr.mxu0 0.0
      %282 = vmatpush1.msra.mxu0 0.0
      %283 = vmatprep.subr.mxu0 0.0
      %284 = vmatpush1.msra.mxu0 0.0
      %285 = vmatprep.subr.mxu0 0.0
      %286 = vmatpush1.msra.mxu0 0.0
      %287 = vmatprep.subr.mxu0 0.0
      %288 = vmatpush1.msra.mxu0 0.0
      %289 = vmatprep.subr.mxu0 0.0
      %290 = vmatpush1.msra.mxu0 0.0
      %291 = vmatprep.subr.mxu0 0.0
      %292 = vmatpush1.msra.mxu0 0.0
      %293 = vmatprep.subr.mxu0 0.0
      %294 = vmatpush1.msra.mxu0 0.0
      %295 = vmatprep.subr.mxu0 0.0
      %296 = vmatpush1.msra.mxu0 0.0
      %297 = vmatprep.mubr.f32.mxu0 0.0
      %298 = vmatmul.mubr.f32.gmra.mrb[0].mxu0 %v210
      %v299 = vpop.f32.mrb[0].mxu0
      %v300 = vadd.f32 0.0, %v299
      %v301 = vpop.f32.mrb[0].mxu0
      %302 = vmatprep.mubr.f32.mxu0 0.0
      %303 = vmatmul.mubr.f32.gmra.mrb[0].mxu0 %v213
      %v304 = vpop.f32.mrb[0].mxu0
      %v305 = vadd.f32 0.0, %v304
      %v306 = vpop.f32.mrb[0].mxu0
      %307 = vmatprep.mubr.f32.mxu0 0.0
      %308 = vmatmul.mubr.f32.gmra.mrb[0].mxu0 %v216
      %v309 = vpop.f32.mrb[0].mxu0
      %v310 = vadd.f32 0.0, %v309
      %v311 = vpop.f32.mrb[0].mxu0
      %312 = vmatprep.mubr.f32.mxu0 0.0
      %313 = vmatmul.mubr.f32.gmra.mrb[0].mxu0 %v219
      %v314 = vpop.f32.mrb[0].mxu0
      %v315 = vadd.f32 0.0, %v314
      %v316 = vpop.f32.mrb[0].mxu0
      %317 = vmatprep.mubr.f32.mxu0 0.0
      %318 = vmatmul.mubr.f32.gmra.mrb[0].mxu0 %v222
      %v319 = vpop.f32.mrb[0].mxu0
      %v320 = vadd.f32 0.0, %v319
      %v321 = vpop.f32.mrb[0].mxu0
      %322 = vmatprep.mubr.f32.mxu0 0.0
      %323 = vmatmul.mubr.f32.gmra.mrb[0].mxu0 %v225
      %v324 = vpop.f32.mrb[0].mxu0
      %v325 = vadd.f32 0.0, %v324
      %v326 = vpop.f32.mrb[0].mxu0
      %327 = vmatprep.mubr.f32.mxu0 0.0
      %328 = vmatmul.mubr.f32.gmra.mrb[0].mxu0 %v228
      %v329 = vpop.f32.mrb[0].mxu0
      %v330 = vadd.f32 0.0, %v329
      %v331 = vpop.f32.mrb[0].mxu0
      %332 = vmatprep.mubr.f32.mxu0 0.0
      %333 = vmatmul.mubr.f32.gmra.mrb[0].mxu0 %v231
      %v334 = vpop.f32.mrb[0].mxu0
      %v335 = vadd.f32 0.0, %v334
      %v336 = vpop.f32.mrb[0].mxu0
      %337 = vdwg.mxu0
      %v338 = vld [vmem:[%s2] sm:$0xff]
      %v339 = vld [vmem:[%s2 + $0x8] sm:$0xff]
      %v340 = vld [vmem:[%s2 + $0x10] sm:$0xff]
      %v341 = vld [vmem:[%s2 + $0x18] sm:$0xff]
      %v342 = vld [vmem:[%s2 + $0x20] sm:$0xff]
      %v343 = vld [vmem:[%s2 + $0x28] sm:$0xff]
      %v344 = vld [vmem:[%s2 + $0x30] sm:$0xff]
      %v345 = vld [vmem:[%s2 + $0x38] sm:$0xff]
      %v346 = vld [vmem:[%s2 + $0x40] sm:$0xff]
      %v347 = vld [vmem:[%s2 + $0x48] sm:$0xff]
      %v348 = vld [vmem:[%s2 + $0x50] sm:$0xff]
      %v349 = vld [vmem:[%s2 + $0x58] sm:$0xff]
      %v350 = vld [vmem:[%s2 + $0x60] sm:$0xff]
      %v351 = vld [vmem:[%s2 + $0x68] sm:$0xff]
      %v352 = vld [vmem:[%s2 + $0x70] sm:$0xff]
      %v353 = vld [vmem:[%s2 + $0x78] sm:$0xff]
      %v354 = vld [vmem:[%s2 + $0x80] sm:$0xff]
      %v355 = vld [vmem:[%s2 + $0x88] sm:$0xff]
      %v356 = vld [vmem:[%s2 + $0x90] sm:$0xff]
      %v357 = vld [vmem:[%s2 + $0x98] sm:$0xff]
      %v358 = vld [vmem:[%s2 + $0xa0] sm:$0xff]
      %v359 = vld [vmem:[%s2 + $0xa8] sm:$0xff]
      %v360 = vld [vmem:[%s2 + $0xb0] sm:$0xff]
      %v361 = vld [vmem:[%s2 + $0xb8] sm:$0xff]
      %v362 = vld [vmem:[%s2 + $0xc0] sm:$0xff]
      %v363 = vld [vmem:[%s2 + $0xc8] sm:$0xff]
      %v364 = vld [vmem:[%s2 + $0xd0] sm:$0xff]
      %v365 = vld [vmem:[%s2 + $0xd8] sm:$0xff]
      %v366 = vld [vmem:[%s2 + $0xe0] sm:$0xff]
      %v367 = vld [vmem:[%s2 + $0xe8] sm:$0xff]
      %v368 = vld [vmem:[%s2 + $0xf0] sm:$0xff]
      %v369 = vld [vmem:[%s2 + $0xf8] sm:$0xff]
      %v370 = vld [vmem:[%s3] sm:$0xff]
      %v371 = vld [vmem:[%s3 + $0x8] sm:$0xff]
      %v372 = vld [vmem:[%s3 + $0x10] sm:$0xff]
      %v373 = vld [vmem:[%s3 + $0x18] sm:$0xff]
      %v374 = vld [vmem:[%s3 + $0x20] sm:$0xff]
      %v375 = vld [vmem:[%s3 + $0x28] sm:$0xff]
      %v376 = vld [vmem:[%s3 + $0x30] sm:$0xff]
      %v377 = vld [vmem:[%s3 + $0x38] sm:$0xff]
      %v378 = vld [vmem:[%s3 + $0x40] sm:$0xff]
      %v379 = vld [vmem:[%s3 + $0x48] sm:$0xff]
      %v380 = vld [vmem:[%s3 + $0x50] sm:$0xff]
      %v381 = vld [vmem:[%s3 + $0x58] sm:$0xff]
      %v382 = vld [vmem:[%s3 + $0x60] sm:$0xff]
      %v383 = vld [vmem:[%s3 + $0x68] sm:$0xff]
      %v384 = vld [vmem:[%s3 + $0x70] sm:$0xff]
      %v385 = vld [vmem:[%s3 + $0x78] sm:$0xff]
      %v386 = vld [vmem:[%s3 + $0x80] sm:$0xff]
      %v387 = vld [vmem:[%s3 + $0x88] sm:$0xff]
      %v388 = vld [vmem:[%s3 + $0x90] sm:$0xff]
      %v389 = vld [vmem:[%s3 + $0x98] sm:$0xff]
      %v390 = vld [vmem:[%s3 + $0xa0] sm:$0xff]
      %v391 = vld [vmem:[%s3 + $0xa8] sm:$0xff]
      %v392 = vld [vmem:[%s3 + $0xb0] sm:$0xff]
      %v393 = vld [vmem:[%s3 + $0xb8] sm:$0xff]
      %v394 = vld [vmem:[%s3 + $0xc0] sm:$0xff]
      %v395 = vld [vmem:[%s3 + $0xc8] sm:$0xff]
      %v396 = vld [vmem:[%s3 + $0xd0] sm:$0xff]
      %v397 = vld [vmem:[%s3 + $0xd8] sm:$0xff]
      %v398 = vld [vmem:[%s3 + $0xe0] sm:$0xff]
      %v399 = vld [vmem:[%s3 + $0xe8] sm:$0xff]
      %v400 = vld [vmem:[%s3 + $0xf0] sm:$0xff]
      %v401 = vld [vmem:[%s3 + $0xf8] sm:$0xff]
      %403 = vset.pattern.permute.xlu0 0
      %404 = vperm.xlu0 %403, %v370
      %v405 = vpop.permute.xlu0 %404
      %408 = vset.pattern.permute.xlu0 0
      %409 = vperm.xlu0 %408, %v371
      %v410 = vpop.permute.xlu0 %409
      %413 = vset.pattern.permute.xlu0 0
      %414 = vperm.xlu0 %413, %v372
      %v415 = vpop.permute.xlu0 %414
      %418 = vset.pattern.permute.xlu0 0
      %419 = vperm.xlu0 %418, %v373
      %v420 = vpop.permute.xlu0 %419
      %423 = vset.pattern.permute.xlu0 0
      %424 = vperm.xlu0 %423, %v374
      %v425 = vpop.permute.xlu0 %424
      %428 = vset.pattern.permute.xlu0 0
      %429 = vperm.xlu0 %428, %v375
      %v430 = vpop.permute.xlu0 %429
      %433 = vset.pattern.permute.xlu0 0
      %434 = vperm.xlu0 %433, %v376
      %v435 = vpop.permute.xlu0 %434
      %438 = vset.pattern.permute.xlu0 0
      %439 = vperm.xlu0 %438, %v377
      %v440 = vpop.permute.xlu0 %439
      %443 = vset.pattern.permute.xlu0 0
      %444 = vperm.xlu0 %443, %v378
      %v445 = vpop.permute.xlu0 %444
      %448 = vset.pattern.permute.xlu0 0
      %449 = vperm.xlu0 %448, %v379
      %v450 = vpop.permute.xlu0 %449
      %453 = vset.pattern.permute.xlu0 0
      %454 = vperm.xlu0 %453, %v380
      %v455 = vpop.permute.xlu0 %454
      %458 = vset.pattern.permute.xlu0 0
      %459 = vperm.xlu0 %458, %v381
      %v460 = vpop.permute.xlu0 %459
      %463 = vset.pattern.permute.xlu0 0
      %464 = vperm.xlu0 %463, %v382
      %v465 = vpop.permute.xlu0 %464
      %468 = vset.pattern.permute.xlu0 0
      %469 = vperm.xlu0 %468, %v383
      %v470 = vpop.permute.xlu0 %469
      %473 = vset.pattern.permute.xlu0 0
      %474 = vperm.xlu0 %473, %v384
      %v475 = vpop.permute.xlu0 %474
      %478 = vset.pattern.permute.xlu0 0
      %479 = vperm.xlu0 %478, %v385
      %v480 = vpop.permute.xlu0 %479
      %483 = vset.pattern.permute.xlu0 0
      %484 = vperm.xlu0 %483, %v386
      %v485 = vpop.permute.xlu0 %484
      %488 = vset.pattern.permute.xlu0 0
      %489 = vperm.xlu0 %488, %v387
      %v490 = vpop.permute.xlu0 %489
      %493 = vset.pattern.permute.xlu0 0
      %494 = vperm.xlu0 %493, %v388
      %v495 = vpop.permute.xlu0 %494
      %498 = vset.pattern.permute.xlu0 0
      %499 = vperm.xlu0 %498, %v389
      %v500 = vpop.permute.xlu0 %499
      %503 = vset.pattern.permute.xlu0 0
      %504 = vperm.xlu0 %503, %v390
      %v505 = vpop.permute.xlu0 %504
      %508 = vset.pattern.permute.xlu0 0
      %509 = vperm.xlu0 %508, %v391
      %v510 = vpop.permute.xlu0 %509
      %513 = vset.pattern.permute.xlu0 0
      %514 = vperm.xlu0 %513, %v392
      %v515 = vpop.permute.xlu0 %514
      %518 = vset.pattern.permute.xlu0 0
      %519 = vperm.xlu0 %518, %v393
      %v520 = vpop.permute.xlu0 %519
      %523 = vset.pattern.permute.xlu0 0
      %524 = vperm.xlu0 %523, %v394
      %v525 = vpop.permute.xlu0 %524
      %528 = vset.pattern.permute.xlu0 0
      %529 = vperm.xlu0 %528, %v395
      %v530 = vpop.permute.xlu0 %529
      %533 = vset.pattern.permute.xlu0 0
      %534 = vperm.xlu0 %533, %v396
      %v535 = vpop.permute.xlu0 %534
      %538 = vset.pattern.permute.xlu0 0
      %539 = vperm.xlu0 %538, %v397
      %v540 = vpop.permute.xlu0 %539
      %543 = vset.pattern.permute.xlu0 0
      %544 = vperm.xlu0 %543, %v398
      %v545 = vpop.permute.xlu0 %544
      %548 = vset.pattern.permute.xlu0 0
      %549 = vperm.xlu0 %548, %v399
      %v550 = vpop.permute.xlu0 %549
      %553 = vset.pattern.permute.xlu0 0
      %554 = vperm.xlu0 %553, %v400
      %v555 = vpop.permute.xlu0 %554
      %558 = vset.pattern.permute.xlu0 0
      %559 = vperm.xlu0 %558, %v401
      %v560 = vpop.permute.xlu0 %559
      %vm562 = vcmask 523264
      %v564 = vsel %vm562, %v338, 0
      %v567 = vsel %vm562, %v339, 0
      %v570 = vsel %vm562, %v340, 0
      %v573 = vsel %vm562, %v341, 0
      %v576 = vsel %vm562, %v342, 0
      %v579 = vsel %vm562, %v343, 0
      %v582 = vsel %vm562, %v344, 0
      %v585 = vsel %vm562, %v345, 0
      %v588 = vsel %vm562, %v346, 0
      %v591 = vsel %vm562, %v347, 0
      %v594 = vsel %vm562, %v348, 0
      %v597 = vsel %vm562, %v349, 0
      %v600 = vsel %vm562, %v350, 0
      %v603 = vsel %vm562, %v351, 0
      %v606 = vsel %vm562, %v352, 0
      %v609 = vsel %vm562, %v353, 0
      %v612 = vsel %vm562, %v354, 0
      %v615 = vsel %vm562, %v355, 0
      %v618 = vsel %vm562, %v356, 0
      %v621 = vsel %vm562, %v357, 0
      %v624 = vsel %vm562, %v358, 0
      %v627 = vsel %vm562, %v359, 0
      %v630 = vsel %vm562, %v360, 0
      %v633 = vsel %vm562, %v361, 0
      %v636 = vsel %vm562, %v362, 0
      %v639 = vsel %vm562, %v363, 0
      %v642 = vsel %vm562, %v364, 0
      %v645 = vsel %vm562, %v365, 0
      %v648 = vsel %vm562, %v366, 0
      %v651 = vsel %vm562, %v367, 0
      %v654 = vsel %vm562, %v368, 0
      %v657 = vsel %vm562, %v369, 0
      %659 = vmatprep.subr.mxu0 0.0
      %660 = vmatpush1.msra.mxu0 %v300
      %661 = vmatprep.subr.mxu0 0.0
      %662 = vmatpush1.msra.mxu0 %v305
      %663 = vmatprep.subr.mxu0 0.0
      %664 = vmatpush1.msra.mxu0 %v310
      %665 = vmatprep.subr.mxu0 0.0
      %666 = vmatpush1.msra.mxu0 %v315
      %667 = vmatprep.subr.mxu0 0.0
      %668 = vmatpush1.msra.mxu0 %v320
      %669 = vmatprep.subr.mxu0 0.0
      %670 = vmatpush1.msra.mxu0 %v325
      %671 = vmatprep.subr.mxu0 0.0
      %672 = vmatpush1.msra.mxu0 %v330
      %673 = vmatprep.subr.mxu0 0.0
      %674 = vmatpush1.msra.mxu0 %v335
      %675 = vmatprep.subr.mxu0 0.0
      %676 = vmatpush1.msra.mxu0 0.0
      %677 = vmatprep.subr.mxu0 0.0
      %678 = vmatpush1.msra.mxu0 0.0
      %679 = vmatprep.subr.mxu0 0.0
      %680 = vmatpush1.msra.mxu0 0.0
      %681 = vmatprep.subr.mxu0 0.0
      %682 = vmatpush1.msra.mxu0 0.0
      %683 = vmatprep.subr.mxu0 0.0
      %684 = vmatpush1.msra.mxu0 0.0
      %685 = vmatprep.subr.mxu0 0.0
      %686 = vmatpush1.msra.mxu0 0.0
      %687 = vmatprep.subr.mxu0 0.0
      %688 = vmatpush1.msra.mxu0 0.0
      %689 = vmatprep.subr.mxu0 0.0
      %690 = vmatpush1.msra.mxu0 0.0
      %691 = vmatprep.subr.mxu0 0.0
      %692 = vmatpush1.msra.mxu0 0.0
      %693 = vmatprep.subr.mxu0 0.0
      %694 = vmatpush1.msra.mxu0 0.0
      %695 = vmatprep.subr.mxu0 0.0
      %696 = vmatpush1.msra.mxu0 0.0
      %697 = vmatprep.subr.mxu0 0.0
      %698 = vmatpush1.msra.mxu0 0.0
      %699 = vmatprep.subr.mxu0 0.0
      %700 = vmatpush1.msra.mxu0 0.0
      %701 = vmatprep.subr.mxu0 0.0
      %702 = vmatpush1.msra.mxu0 0.0
      %703 = vmatprep.subr.mxu0 0.0
      %704 = vmatpush1.msra.mxu0 0.0
      %705 = vmatprep.subr.mxu0 0.0
      %706 = vmatpush1.msra.mxu0 0.0
      %707 = vmatprep.subr.mxu0 0.0
      %708 = vmatpush1.msra.mxu0 0.0
      %709 = vmatprep.subr.mxu0 0.0
      %710 = vmatpush1.msra.mxu0 0.0
      %711 = vmatprep.subr.mxu0 0.0
      %712 = vmatpush1.msra.mxu0 0.0
      %713 = vmatprep.subr.mxu0 0.0
      %714 = vmatpush1.msra.mxu0 0.0
      %715 = vmatprep.subr.mxu0 0.0
      %716 = vmatpush1.msra.mxu0 0.0
      %717 = vmatprep.subr.mxu0 0.0
      %718 = vmatpush1.msra.mxu0 0.0
      %719 = vmatprep.subr.mxu0 0.0
      %720 = vmatpush1.msra.mxu0 0.0
      %721 = vmatprep.subr.mxu0 0.0
      %722 = vmatpush1.msra.mxu0 0.0
      %723 = vmatprep.mubr.f32.mxu0 0.0
      %724 = vmatmul.mubr.f32.gmra.mrb[0].mxu0 %v564
      %v725 = vpop.f32.mrb[0].mxu0
      %v726 = vadd.f32 %v405, %v725
      %v727 = vpop.f32.mrb[0].mxu0
      %728 = vmatprep.mubr.f32.mxu0 0.0
      %729 = vmatmul.mubr.f32.gmra.mrb[0].mxu0 %v567
      %v730 = vpop.f32.mrb[0].mxu0
      %v731 = vadd.f32 %v410, %v730
      %v732 = vpop.f32.mrb[0].mxu0
      %733 = vmatprep.mubr.f32.mxu0 0.0
      %734 = vmatmul.mubr.f32.gmra.mrb[0].mxu0 %v570
      %v735 = vpop.f32.mrb[0].mxu0
      %v736 = vadd.f32 %v415, %v735
      %v737 = vpop.f32.mrb[0].mxu0
      %738 = vmatprep.mubr.f32.mxu0 0.0
      %739 = vmatmul.mubr.f32.gmra.mrb[0].mxu0 %v573
      %v740 = vpop.f32.mrb[0].mxu0
      %v741 = vadd.f32 %v420, %v740
      %v742 = vpop.f32.mrb[0].mxu0
      %743 = vmatprep.mubr.f32.mxu0 0.0
      %744 = vmatmul.mubr.f32.gmra.mrb[0].mxu0 %v576
      %v745 = vpop.f32.mrb[0].mxu0
      %v746 = vadd.f32 %v425, %v745
      %v747 = vpop.f32.mrb[0].mxu0
      %748 = vmatprep.mubr.f32.mxu0 0.0
      %749 = vmatmul.mubr.f32.gmra.mrb[0].mxu0 %v579
      %v750 = vpop.f32.mrb[0].mxu0
      %v751 = vadd.f32 %v430, %v750
      %v752 = vpop.f32.mrb[0].mxu0
      %753 = vmatprep.mubr.f32.mxu0 0.0
      %754 = vmatmul.mubr.f32.gmra.mrb[0].mxu0 %v582
      %v755 = vpop.f32.mrb[0].mxu0
      %v756 = vadd.f32 %v435, %v755
      %v757 = vpop.f32.mrb[0].mxu0
      %758 = vmatprep.mubr.f32.mxu0 0.0
      %759 = vmatmul.mubr.f32.gmra.mrb[0].mxu0 %v585
      %v760 = vpop.f32.mrb[0].mxu0
      %v761 = vadd.f32 %v440, %v760
      %v762 = vpop.f32.mrb[0].mxu0
      %763 = vmatprep.mubr.f32.mxu0 0.0
      %764 = vmatmul.mubr.f32.gmra.mrb[0].mxu0 %v588
      %v765 = vpop.f32.mrb[0].mxu0
      %v766 = vadd.f32 %v445, %v765
      %v767 = vpop.f32.mrb[0].mxu0
      %768 = vmatprep.mubr.f32.mxu0 0.0
      %769 = vmatmul.mubr.f32.gmra.mrb[0].mxu0 %v591
      %v770 = vpop.f32.mrb[0].mxu0
      %v771 = vadd.f32 %v450, %v770
      %v772 = vpop.f32.mrb[0].mxu0
      %773 = vmatprep.mubr.f32.mxu0 0.0
      %774 = vmatmul.mubr.f32.gmra.mrb[0].mxu0 %v594
      %v775 = vpop.f32.mrb[0].mxu0
      %v776 = vadd.f32 %v455, %v775
      %v777 = vpop.f32.mrb[0].mxu0
      %778 = vmatprep.mubr.f32.mxu0 0.0
      %779 = vmatmul.mubr.f32.gmra.mrb[0].mxu0 %v597
      %v780 = vpop.f32.mrb[0].mxu0
      %v781 = vadd.f32 %v460, %v780
      %v782 = vpop.f32.mrb[0].mxu0
      %783 = vmatprep.mubr.f32.mxu0 0.0
      %784 = vmatmul.mubr.f32.gmra.mrb[0].mxu0 %v600
      %v785 = vpop.f32.mrb[0].mxu0
      %v786 = vadd.f32 %v465, %v785
      %v787 = vpop.f32.mrb[0].mxu0
      %788 = vmatprep.mubr.f32.mxu0 0.0
      %789 = vmatmul.mubr.f32.gmra.mrb[0].mxu0 %v603
      %v790 = vpop.f32.mrb[0].mxu0
      %v791 = vadd.f32 %v470, %v790
      %v792 = vpop.f32.mrb[0].mxu0
      %793 = vmatprep.mubr.f32.mxu0 0.0
      %794 = vmatmul.mubr.f32.gmra.mrb[0].mxu0 %v606
      %v795 = vpop.f32.mrb[0].mxu0
      %v796 = vadd.f32 %v475, %v795
      %v797 = vpop.f32.mrb[0].mxu0
      %798 = vmatprep.mubr.f32.mxu0 0.0
      %799 = vmatmul.mubr.f32.gmra.mrb[0].mxu0 %v609
      %v800 = vpop.f32.mrb[0].mxu0
      %v801 = vadd.f32 %v480, %v800
      %v802 = vpop.f32.mrb[0].mxu0
      %803 = vmatprep.mubr.f32.mxu0 0.0
      %804 = vmatmul.mubr.f32.gmra.mrb[0].mxu0 %v612
      %v805 = vpop.f32.mrb[0].mxu0
      %v806 = vadd.f32 %v485, %v805
      %v807 = vpop.f32.mrb[0].mxu0
      %808 = vmatprep.mubr.f32.mxu0 0.0
      %809 = vmatmul.mubr.f32.gmra.mrb[0].mxu0 %v615
      %v810 = vpop.f32.mrb[0].mxu0
      %v811 = vadd.f32 %v490, %v810
      %v812 = vpop.f32.mrb[0].mxu0
      %813 = vmatprep.mubr.f32.mxu0 0.0
      %814 = vmatmul.mubr.f32.gmra.mrb[0].mxu0 %v618
      %v815 = vpop.f32.mrb[0].mxu0
      %v816 = vadd.f32 %v495, %v815
      %v817 = vpop.f32.mrb[0].mxu0
      %818 = vmatprep.mubr.f32.mxu0 0.0
      %819 = vmatmul.mubr.f32.gmra.mrb[0].mxu0 %v621
      %v820 = vpop.f32.mrb[0].mxu0
      %v821 = vadd.f32 %v500, %v820
      %v822 = vpop.f32.mrb[0].mxu0
      %823 = vmatprep.mubr.f32.mxu0 0.0
      %824 = vmatmul.mubr.f32.gmra.mrb[0].mxu0 %v624
      %v825 = vpop.f32.mrb[0].mxu0
      %v826 = vadd.f32 %v505, %v825
      %v827 = vpop.f32.mrb[0].mxu0
      %828 = vmatprep.mubr.f32.mxu0 0.0
      %829 = vmatmul.mubr.f32.gmra.mrb[0].mxu0 %v627
      %v830 = vpop.f32.mrb[0].mxu0
      %v831 = vadd.f32 %v510, %v830
      %v832 = vpop.f32.mrb[0].mxu0
      %833 = vmatprep.mubr.f32.mxu0 0.0
      %834 = vmatmul.mubr.f32.gmra.mrb[0].mxu0 %v630
      %v835 = vpop.f32.mrb[0].mxu0
      %v836 = vadd.f32 %v515, %v835
      %v837 = vpop.f32.mrb[0].mxu0
      %838 = vmatprep.mubr.f32.mxu0 0.0
      %839 = vmatmul.mubr.f32.gmra.mrb[0].mxu0 %v633
      %v840 = vpop.f32.mrb[0].mxu0
      %v841 = vadd.f32 %v520, %v840
      %v842 = vpop.f32.mrb[0].mxu0
      %843 = vmatprep.mubr.f32.mxu0 0.0
      %844 = vmatmul.mubr.f32.gmra.mrb[0].mxu0 %v636
      %v845 = vpop.f32.mrb[0].mxu0
      %v846 = vadd.f32 %v525, %v845
      %v847 = vpop.f32.mrb[0].mxu0
      %848 = vmatprep.mubr.f32.mxu0 0.0
      %849 = vmatmul.mubr.f32.gmra.mrb[0].mxu0 %v639
      %v850 = vpop.f32.mrb[0].mxu0
      %v851 = vadd.f32 %v530, %v850
      %v852 = vpop.f32.mrb[0].mxu0
      %853 = vmatprep.mubr.f32.mxu0 0.0
      %854 = vmatmul.mubr.f32.gmra.mrb[0].mxu0 %v642
      %v855 = vpop.f32.mrb[0].mxu0
      %v856 = vadd.f32 %v535, %v855
      %v857 = vpop.f32.mrb[0].mxu0
      %858 = vmatprep.mubr.f32.mxu0 0.0
      %859 = vmatmul.mubr.f32.gmra.mrb[0].mxu0 %v645
      %v860 = vpop.f32.mrb[0].mxu0
      %v861 = vadd.f32 %v540, %v860
      %v862 = vpop.f32.mrb[0].mxu0
      %863 = vmatprep.mubr.f32.mxu0 0.0
      %864 = vmatmul.mubr.f32.gmra.mrb[0].mxu0 %v648
      %v865 = vpop.f32.mrb[0].mxu0
      %v866 = vadd.f32 %v545, %v865
      %v867 = vpop.f32.mrb[0].mxu0
      %868 = vmatprep.mubr.f32.mxu0 0.0
      %869 = vmatmul.mubr.f32.gmra.mrb[0].mxu0 %v651
      %v870 = vpop.f32.mrb[0].mxu0
      %v871 = vadd.f32 %v550, %v870
      %v872 = vpop.f32.mrb[0].mxu0
      %873 = vmatprep.mubr.f32.mxu0 0.0
      %874 = vmatmul.mubr.f32.gmra.mrb[0].mxu0 %v654
      %v875 = vpop.f32.mrb[0].mxu0
      %v876 = vadd.f32 %v555, %v875
      %v877 = vpop.f32.mrb[0].mxu0
      %878 = vmatprep.mubr.f32.mxu0 0.0
      %879 = vmatmul.mubr.f32.gmra.mrb[0].mxu0 %v657
      %v880 = vpop.f32.mrb[0].mxu0
      %v881 = vadd.f32 %v560, %v880
      %v882 = vpop.f32.mrb[0].mxu0
      %883 = vdwg.mxu0
      %v884 = vmax.f32 %v726, 0.0
      %v885 = vmax.f32 %v731, 0.0
      %v886 = vmax.f32 %v736, 0.0
      %v887 = vmax.f32 %v741, 0.0
      %v888 = vmax.f32 %v746, 0.0
      %v889 = vmax.f32 %v751, 0.0
      %v890 = vmax.f32 %v756, 0.0
      %v891 = vmax.f32 %v761, 0.0
      %v892 = vmax.f32 %v766, 0.0
      %v893 = vmax.f32 %v771, 0.0
      %v894 = vmax.f32 %v776, 0.0
      %v895 = vmax.f32 %v781, 0.0
      %v896 = vmax.f32 %v786, 0.0
      %v897 = vmax.f32 %v791, 0.0
      %v898 = vmax.f32 %v796, 0.0
      %v899 = vmax.f32 %v801, 0.0
      %v900 = vmax.f32 %v806, 0.0
      %v901 = vmax.f32 %v811, 0.0
      %v902 = vmax.f32 %v816, 0.0
      %v903 = vmax.f32 %v821, 0.0
      %v904 = vmax.f32 %v826, 0.0
      %v905 = vmax.f32 %v831, 0.0
      %v906 = vmax.f32 %v836, 0.0
      %v907 = vmax.f32 %v841, 0.0
      %v908 = vmax.f32 %v846, 0.0
      %v909 = vmax.f32 %v851, 0.0
      %v910 = vmax.f32 %v856, 0.0
      %v911 = vmax.f32 %v861, 0.0
      %v912 = vmax.f32 %v866, 0.0
      %v913 = vmax.f32 %v871, 0.0
      %v914 = vmax.f32 %v876, 0.0
      %v915 = vmax.f32 %v881, 0.0
      %vm916 = vcmask 261120
      %917 = vst.msk [vmem:[%s197] sm:$0xff] %vm916, %v884
      %918 = vst.msk [vmem:[%s197 + $0x8] sm:$0xff] %vm916, %v885
      %919 = vst.msk [vmem:[%s197 + $0x10] sm:$0xff] %vm916, %v886
      %920 = vst.msk [vmem:[%s197 + $0x18] sm:$0xff] %vm916, %v887
      %921 = vst.msk [vmem:[%s197 + $0x20] sm:$0xff] %vm916, %v888
      %922 = vst.msk [vmem:[%s197 + $0x28] sm:$0xff] %vm916, %v889
      %923 = vst.msk [vmem:[%s197 + $0x30] sm:$0xff] %vm916, %v890
      %924 = vst.msk [vmem:[%s197 + $0x38] sm:$0xff] %vm916, %v891
      %925 = vst.msk [vmem:[%s197 + $0x40] sm:$0xff] %vm916, %v892
      %926 = vst.msk [vmem:[%s197 + $0x48] sm:$0xff] %vm916, %v893
      %927 = vst.msk [vmem:[%s197 + $0x50] sm:$0xff] %vm916, %v894
      %928 = vst.msk [vmem:[%s197 + $0x58] sm:$0xff] %vm916, %v895
      %929 = vst.msk [vmem:[%s197 + $0x60] sm:$0xff] %vm916, %v896
      %930 = vst.msk [vmem:[%s197 + $0x68] sm:$0xff] %vm916, %v897
      %931 = vst.msk [vmem:[%s197 + $0x70] sm:$0xff] %vm916, %v898
      %932 = vst.msk [vmem:[%s197 + $0x78] sm:$0xff] %vm916, %v899
      %933 = vst.msk [vmem:[%s197 + $0x80] sm:$0xff] %vm916, %v900
      %934 = vst.msk [vmem:[%s197 + $0x88] sm:$0xff] %vm916, %v901
      %935 = vst.msk [vmem:[%s197 + $0x90] sm:$0xff] %vm916, %v902
      %936 = vst.msk [vmem:[%s197 + $0x98] sm:$0xff] %vm916, %v903
      %937 = vst.msk [vmem:[%s197 + $0xa0] sm:$0xff] %vm916, %v904
      %938 = vst.msk [vmem:[%s197 + $0xa8] sm:$0xff] %vm916, %v905
      %939 = vst.msk [vmem:[%s197 + $0xb0] sm:$0xff] %vm916, %v906
      %940 = vst.msk [vmem:[%s197 + $0xb8] sm:$0xff] %vm916, %v907
      %941 = vst.msk [vmem:[%s197 + $0xc0] sm:$0xff] %vm916, %v908
      %942 = vst.msk [vmem:[%s197 + $0xc8] sm:$0xff] %vm916, %v909
      %943 = vst.msk [vmem:[%s197 + $0xd0] sm:$0xff] %vm916, %v910
      %944 = vst.msk [vmem:[%s197 + $0xd8] sm:$0xff] %vm916, %v911
      %945 = vst.msk [vmem:[%s197 + $0xe0] sm:$0xff] %vm916, %v912
      %946 = vst.msk [vmem:[%s197 + $0xe8] sm:$0xff] %vm916, %v913
      %947 = vst.msk [vmem:[%s197 + $0xf0] sm:$0xff] %vm916, %v914
      %948 = vst.msk [vmem:[%s197 + $0xf8] sm:$0xff] %vm916, %v915
      %p949 = scmp.lt.s32.totalorder %s15, 1
      %s950 = scalar_select %p949, %s15, 1
      %s951 = smul.addr %s950, 32
      %s952 = smul.addr %s951, 8
      %s953 = scalar_lea.vmem %s4, %s952
      // Predicated region
      $region37: #{tpu_custom_call.1} parent=35 // pred_check
        %p954 = pneg %p122
      $region38: #{tpu_custom_call.1} parent=35 // pred_check_branch
        %956 = sbr.rel (%p954) target = $region40
      $region39: #{tpu_custom_call.1} parent=35 // pred_region
        _
      $region40: #{tpu_custom_call.1} parent=35 // pred_fallthru
        _
    $region36: #{tpu_custom_call.1} parent=5 // pred_fallthru
      _
    %p957 = scmp.le.s32.totalorder 2, %s10
    // Predicated region
    $region41: #{tpu_custom_call.1} parent=5 // pred_check
      %p958 = pneg %p957
    $region42: #{tpu_custom_call.1} parent=5 // pred_check_branch
      %960 = sbr.rel (%p958) target = $region44
    $region43: #{tpu_custom_call.1} parent=5 // pred_region
      %s961 = ssub.s32 %s10, 2
      // Predicated region
      $region45: #{tpu_custom_call.1} parent=43 // pred_check
        %p962 = pneg %p128
      $region46: #{tpu_custom_call.1} parent=43 // pred_check_branch
        %964 = sbr.rel (%p962) target = $region48
      $region47: #{tpu_custom_call.1} parent=43 // pred_region
        %p965 = scmp.lt.s32.totalorder %s16, 1
        %s966 = scalar_select %p965, %s16, 1
        %s967 = smul.addr %s966, 32
        %s968 = smul.addr %s967, 8
        %s969 = scalar_lea.vmem %s4, %s968
      $region48: #{tpu_custom_call.1} parent=43 // pred_fallthru
        _
    $region44: #{tpu_custom_call.1} parent=5 // pred_fallthru
      _
  $region6: #{tpu_custom_call.1} parent=0 // loop_footer
    %s14 = sadd.s32 1, %s10
  $region7: #{tpu_custom_call.1} parent=0 // loop_footer_branch
    %9 = sbr.rel target = $region3
  $region8: #{tpu_custom_call.1} parent=0 // loop_exit
    _

</llo_original>
